<compile_context>
chip_gen: v6e
topology: v6e:2x2x1
jax: 0.10.0
libtpu: 0.0.40
codegen_flags: <defaults>
</compile_context>

<pallas_src>
import functools
import numpy as np
import jax
import jax.numpy as jnp
from jax.experimental import pallas as pl
from jax.experimental.pallas import tpu as pltpu


ETYPES_DD = [
    ('drug', 'contraindication', 'disease'),
    ('drug', 'indication', 'disease'),
    ('drug', 'off-label use', 'disease'),
    ('disease', 'rev_contraindication', 'drug'),
    ('disease', 'rev_indication', 'drug'),
    ('disease', 'rev_off-label use', 'drug'),
]

# Storage dtype of the gathered DistMult operands (mem-bound path): bf16 halves the
# dominant HBM read traffic on every generation.  Kernels upcast to f32 BEFORE the
# multiply, so this is safe on v5e (no bf16 VPU) as well.
OPERAND_DTYPE = jnp.bfloat16

# ---- tiling constants ----
SIM_TILE_Q = 256                     # sim-matrix output row tile
SIM_TILE_N = 256                     # sim-matrix output col (key) tile
SIM_TILE_P = 512                     # contraction slab -> VMEM independent of profile_dim
PROTO_TILE_N = 256
DM_VMEM_BUDGET = 24 * 1024 * 1024    # 2 operands x 2 pipeline buffers per step (v7x-safe)
NORM_BLOCK_BYTES = 2 * 1024 * 1024   # l2-normalize row-tile target block size


def _round_up(x, m):
    return ((x + m - 1) // m) * m


def _sigmoid(x):
    # Explicit exp-based sigmoid (EUP exp inside Pallas); same formula in the refs.
    return 1.0 / (1.0 + jnp.exp(-x))


def _pick_dm_rows(total_edges, hdim, itemsize):
    """Rows of 128 edges per DistMult grid step.

    Bigger tiles amortize the ~0.35us/step overhead (v5e/v6e review item); capped so
    2 operands x 2 buffers x rows*128*H*itemsize stays under ~24 MiB (v7x 64 MiB VMEM)
    and so tiny batches don't drown in per-etype padding.
    """
    cap = max(8, (DM_VMEM_BUDGET // (4 * 128 * hdim * itemsize)) // 8 * 8)
    for rows in (32, 16, 8):
        if rows <= cap and total_edges >= rows * 128 * 4:
            return rows
    return 8


# ------------------------- kernel 1: fused DistMult scoring -------------------------

def _distmult_kernel(rel_ref, hu_ref, hv_ref, w_ref, o_ref, *, apply_sigmoid):
    # rel_ref: scalar-prefetched per-tile relation ids (consumed by index_maps only)
    # hu/hv block: (rows, 128, H) bf16; w block: (1, 1, H) = relation row of this tile
    del rel_ref
    w = w_ref[...].astype(jnp.float32)
    prod = hu_ref[...].astype(jnp.float32) * w * hv_ref[...].astype(jnp.float32)
    # NOTE: lane reduce goes to the XLU; it stays filler under the memory bound
    # (only move it to the MXU if a bundle dump shows the XLU slot saturated).
    s = jnp.sum(prod, axis=-1)                      # -> (rows, 128) lane-dense
    if apply_sigmoid:
        s = _sigmoid(s)
    o_ref[...] = s


def _distmult_call(hu, hv, W, rel_tile_ids, rows, apply_sigmoid):
    e_pad, H = hu.shape
    nrows = e_pad // 128
    n_tiles = nrows // rows
    hu3 = hu.reshape(nrows, 128, H)                 # free row-major reshape
    hv3 = hv.reshape(nrows, 128, H)
    w3 = W.reshape(W.shape[0], 1, W.shape[1])
    out = pl.pallas_call(
        functools.partial(_distmult_kernel, apply_sigmoid=apply_sigmoid),
        out_shape=jax.ShapeDtypeStruct((nrows, 128), jnp.float32),
        grid_spec=pltpu.PrefetchScalarGridSpec(
            num_scalar_prefetch=1,
            grid=(n_tiles,),
            in_specs=[
                pl.BlockSpec((rows, 128, H), lambda i, rel: (i, 0, 0)),
                pl.BlockSpec((rows, 128, H), lambda i, rel: (i, 0, 0)),
                pl.BlockSpec((1, 1, H), lambda i, rel: (rel[i], 0, 0)),
            ],
            out_specs=pl.BlockSpec((rows, 128), lambda i, rel: (i, 0)),
        ),
        compiler_params=pltpu.CompilerParams(
            dimension_semantics=("parallel",),
            # v5e's scoped default is 16 MiB; raise explicitly but stay < v7x 64 MiB.
            vmem_limit_bytes=40 * 1024 * 1024),
    )(rel_tile_ids, hu3, hv3, w3)
    return out.reshape(-1)


def _fused_distmult_from_indices(table, u_idx_parts, v_idx_parts, rel_list, W,
                                 apply_sigmoid):
    """One pallas_call over all etypes.

    `u_idx_parts`/`v_idx_parts` are host int arrays of GLOBAL row indices into
    `table` (bf16).  Only the tiny index vectors are padded/concatenated; a single
    jnp.take per side gathers straight into the fused tile-aligned layout -- no
    [E, H] pad/concat copies of the operands.
    # TODO(synk): a further step would gather in-kernel via scalar-prefetched edge
    # ids + manual DMA from `table` kept in pl.ANY/HBM (removes the gather write).
    """
    H = int(table.shape[1])
    sizes = [int(u.shape[0]) for u in u_idx_parts]
    rows = _pick_dm_rows(sum(sizes), H, jnp.dtype(table.dtype).itemsize)
    tile_e = rows * 128
    u_pad, v_pad, tile_rels, offs = [], [], [], []
    off = 0
    for u, v, r in zip(u_idx_parts, v_idx_parts, rel_list):
        e = int(u.shape[0])
        e_pad = _round_up(max(e, 1), tile_e)
        u_pad.append(np.pad(np.asarray(u), (0, e_pad - e)))
        v_pad.append(np.pad(np.asarray(v), (0, e_pad - e)))
        tile_rels += [r] * (e_pad // tile_e)
        offs.append(off)
        off += e_pad
    u_all = jnp.asarray(np.concatenate(u_pad), jnp.int32)
    v_all = jnp.asarray(np.concatenate(v_pad), jnp.int32)
    hu = jnp.take(table, u_all, axis=0)             # ONE gather per side, final layout
    hv = jnp.take(table, v_all, axis=0)
    flat = _distmult_call(hu, hv, W, jnp.asarray(tile_rels, jnp.int32), rows,
                          apply_sigmoid)
    return [flat[o:o + e] for o, e in zip(offs, sizes)]


# ------------------------- kernel 2: cosine similarity -------------------------

def _l2_normalize_kernel(x_ref, o_ref):
    x = x_ref[...].astype(jnp.float32)
    sq = jnp.sum(x * x, axis=1, keepdims=True)
    # rsqrt(max(||x||^2, eps^2)) == 1 / max(||x||, eps), eps = 1e-8 (sim_matrix clamp)
    o_ref[...] = x * jax.lax.rsqrt(jnp.maximum(sq, 1e-16))


def l2_normalize_rows(x):
    """Row-wise L2 normalization; done ONCE per forward and reused for all etypes.
    Row tile scales with profile_dim so a block stays ~2 MiB (mem-bound kernel,
    small tiles cost nothing; never exceeds v7x's 64 MiB VMEM)."""
    r, p = x.shape
    max_rows = max(8, (NORM_BLOCK_BYTES // (4 * p)) // 8 * 8)
    tile = min(max_rows, _round_up(r, 8))
    r_pad = _round_up(r, tile)
    x_p = jnp.pad(x, ((0, r_pad - r), (0, 0)))
    out = pl.pallas_call(
        _l2_normalize_kernel,
        out_shape=jax.ShapeDtypeStruct((r_pad, p), jnp.float32),
        grid=(r_pad // tile,),
        in_specs=[pl.BlockSpec((tile, p), lambda i: (i, 0))],
        out_specs=pl.BlockSpec((tile, p), lambda i: (i, 0)),
        compiler_params=pltpu.CompilerParams(dimension_semantics=("parallel",)),
    )(x_p)
    return out[:r]


def _sim_matmul_kernel(a_ref, bt_ref, o_ref, acc_ref):
    @pl.when(pl.program_id(2) == 0)
    def _():
        acc_ref[...] = jnp.zeros_like(acc_ref)
    acc_ref[...] += jnp.dot(a_ref[...], bt_ref[...],
                            preferred_element_type=jnp.float32)
    @pl.when(pl.program_id(2) == pl.num_programs(2) - 1)
    def _():
        o_ref[...] = acc_ref[...]


def sim_matmul(a_n, b_n):
    """Tiled cosine-similarity matmul on pre-normalized rows (== sim_matrix).

    The key operand is transposed ONCE in the wrapper so the MXU sees a [p, nk]
    RHS (no per-tile XLU relayout), and the contraction axis is gridded with an
    f32 accumulator so VMEM use is independent of profile_dim.
    Kept in f32: bf16 inputs could flip near-tie top-k selections feeding the proto path.
    # TODO(synk): for v7x, fusing the 6 per-etype sim calls into one padded call
    # would present a larger parallel grid to both TensorCores.
    """
    nq, p = a_n.shape
    nk, _ = b_n.shape
    tq = min(SIM_TILE_Q, _round_up(nq, 8))
    tk = min(SIM_TILE_N, _round_up(nk, 128))
    tp = min(SIM_TILE_P, _round_up(p, 128))
    nq_pad, nk_pad, p_pad = _round_up(nq, tq), _round_up(nk, tk), _round_up(p, tp)
    a_p = jnp.pad(a_n, ((0, nq_pad - nq), (0, p_pad - p)))
    bt_p = jnp.pad(b_n.T, ((0, p_pad - p), (0, nk_pad - nk)))
    out = pl.pallas_call(
        _sim_matmul_kernel,
        out_shape=jax.ShapeDtypeStruct((nq_pad, nk_pad), jnp.float32),
        grid=(nq_pad // tq, nk_pad // tk, p_pad // tp),
        in_specs=[pl.BlockSpec((tq, tp), lambda i, j, kk: (i, kk)),
                  pl.BlockSpec((tp, tk), lambda i, j, kk: (kk, j))],
        out_specs=pl.BlockSpec((tq, tk), lambda i, j, kk: (i, j)),
        scratch_shapes=[pltpu.VMEM((tq, tk), jnp.float32)],
        compiler_params=pltpu.CompilerParams(
            dimension_semantics=("parallel", "parallel", "arbitrary"),
            vmem_limit_bytes=40 * 1024 * 1024),
    )(a_p, bt_p)
    return out[:nq, :nk]


# ------------------------- kernel 3: prototype aggregation + learned gate ---------

def _proto_gate_kernel(K, q_ref, embed_ref, coef_ref, wq_ref, wo_ref, b_ref, o_ref):
    q = q_ref[...].astype(jnp.float32)              # (TILE_N, H)
    coef = coef_ref[...].astype(jnp.float32)        # (TILE_N, K)
    # F.normalize(coef, p=1, dim=1)
    coefn = coef / jnp.maximum(jnp.sum(jnp.abs(coef), axis=1, keepdims=True), 1e-12)
    # out = sum_k coef_k * key_embed_k ; embed has K leading -> free static slices
    acc = jnp.zeros_like(q)
    for kk in range(K):
        acc = acc + coefn[:, kk:kk + 1] * embed_ref[kk].astype(jnp.float32)
    # learned gate: sigmoid(W_gate @ [q, out]) as VPU multiply + lane reduce
    wq = wq_ref[...].astype(jnp.float32)            # (1, H)
    wo = wo_ref[...].astype(jnp.float32)            # (1, H)
    logits = jnp.sum(q * wq + acc * wo, axis=1, keepdims=True) + b_ref[...]
    gate = _sigmoid(logits)                         # (TILE_N, 1)
    o_ref[...] = (1.0 - gate) * q + gate * acc


def proto_gate(q_emb, embed_knh, coef, w_gate, b_gate, tile):
    """proto = (1-g)*q + g*sum_k(L1norm(coef)_k * key_k), g = sigmoid(Linear([q, out])).
    Inputs are already padded to a multiple of `tile` rows (indices were padded
    before the gathers, so no extra [N,H] pad copies happen here)."""
    n_pad, hdim = q_emb.shape
    k = int(embed_knh.shape[0])
    wq = w_gate[:, :hdim]                            # (1, H)
    wo = w_gate[:, hdim:]                            # (1, H)
    b = b_gate.reshape(1, 1).astype(jnp.float32)
    return pl.pallas_call(
        functools.partial(_proto_gate_kernel, k),
        out_shape=jax.ShapeDtypeStruct((n_pad, hdim), jnp.float32),
        grid=(n_pad // tile,),
        in_specs=[
            pl.BlockSpec((tile, hdim), lambda i: (i, 0)),
            pl.BlockSpec((k, tile, hdim), lambda i: (0, i, 0)),
            pl.BlockSpec((tile, k), lambda i: (i, 0)),
            pl.BlockSpec((1, hdim), lambda i: (0, 0)),
            pl.BlockSpec((1, hdim), lambda i: (0, 0)),
            pl.BlockSpec((1, 1), lambda i: (0, 0)),
        ],
        out_specs=pl.BlockSpec((tile, hdim), lambda i: (i, 0)),
        compiler_params=pltpu.CompilerParams(dimension_semantics=("parallel",)),
    )(q_emb, embed_knh, coef, wq, wo, b)


# ------------------------- forward (glue + kernels) -------------------------

def distmult_predictor_forward(h, params, batch_edges, G_keys, disease_profiles,
                               pretrain_mode=False, proto=True, proto_k=4,
                               agg_measure='learn', sim_measure='all_nodes_profile',
                               only_relation=None):
    """
    h:            dict node_type -> [num_nodes, n_hid]
    batch_edges:  dict etype -> (src_idx [E], dst_idx [E])   (the training graph `graph`)
    G_keys:       dict etype -> (src_key_ids, dst_key_ids)   (nonzero-degree nodes of `G`)
    disease_profiles: [n_disease, profile_dim]               ('all_nodes_profile' vectors)
    """
    # TODO(synk): DGL local_scope/degree bookkeeping and the bert / random-walk
    # sim_measure branches have no Pallas equivalent; degree/profile sets are passed in.
    W = params['W']
    rel2idx = params['rel2idx']
    scores = {}

    # Host copies of all index data ONCE up front -> no per-etype device->host syncs
    # serializing the later kernel launches.
    batch_np = {et: (np.asarray(e[0]).astype(np.int64), np.asarray(e[1]).astype(np.int64))
                for et, e in batch_edges.items()}
    gkeys_np = {et: (np.asarray(k[0]).astype(np.int64), np.asarray(k[1]).astype(np.int64))
                for et, k in G_keys.items()}

    # ---------------- pretrain mode ----------------
    if pretrain_mode:
        etype_list = [et for et in batch_np if batch_np[et][0].shape[0] > 0]
        if not etype_list:
            return scores, jnp.zeros((0,), jnp.float32)
        node_types = sorted({et[0] for et in etype_list} | {et[2] for et in etype_list})
        offsets, tabs, off = {}, [], 0
        for nt in node_types:
            offsets[nt] = off
            tabs.append(h[nt].astype(OPERAND_DTYPE))
            off += int(h[nt].shape[0])
        table = jnp.concatenate(tabs, axis=0)
        u_parts = [offsets[et[0]] + batch_np[et][0] for et in etype_list]
        v_parts = [offsets[et[2]] + batch_np[et][1] for et in etype_list]
        rel_list = [rel2idx[et] for et in etype_list]
        segs = _fused_distmult_from_indices(table, u_parts, v_parts, rel_list, W,
                                            apply_sigmoid=True)
        for et, seg in zip(etype_list, segs):
            scores[et] = seg
        return scores, jnp.concatenate(segs)

    # ---------------- fine-tune mode ----------------
    etypes_train = list(ETYPES_DD)
    if only_relation is not None:
        rel_map = {
            'indication': ['indication', 'rev_indication'],
            'contraindication': ['contraindication', 'rev_contraindication'],
            'off-label': ['off-label use', 'rev_off-label use'],
        }
        etypes_train = [e for e in ETYPES_DD if e[1] in rel_map[only_relation]]

    active = [et for et in etypes_train if batch_np[et][0].shape[0] > 0]
    for et in etypes_train:
        if et not in active:
            scores[et] = jnp.zeros((0,), jnp.float32)
    if not active:
        return scores, np.zeros((0,), np.float32)

    recs = [{'etype': et} for et in active]
    proto_all = None
    n_total = 0
    if proto:
        if agg_measure != 'learn':
            raise NotImplementedError("only agg_measure='learn' is implemented")
        if sim_measure not in ('all_nodes_profile', 'all_nodes_profile_more',
                               'protein_profile'):
            raise NotImplementedError("only profile-based sim_measure is implemented")

        # normalize all profiles ONCE, reuse for every etype
        profiles_n = l2_normalize_rows(disease_profiles.astype(jnp.float32))

        # (a) host-only bookkeeping first
        for rec in recs:
            et = rec['etype']
            src_t, _, dst_t = et
            s_ids, d_ids = batch_np[et]
            if src_t == 'disease':
                dis_edge, k_ids = s_ids, gkeys_np[et][0]
            else:
                dis_edge, k_ids = d_ids, gkeys_np[et][1]
            q_ids, inv = np.unique(dis_edge, return_inverse=True)
            # torch reference gates "drop self-similarity column" on COUNT equality of
            # the *src* side (src_h vs src_h_keys), regardless of which side is disease.
            drop_self = (np.unique(s_ids).shape[0] == gkeys_np[et][0].shape[0])
            rec.update(q_ids=q_ids, k_ids=k_ids, inv=inv.astype(np.int64),
                       drop_self=bool(drop_self), n_q=int(q_ids.shape[0]))

        # (b) device work: sim + top-k per etype (no host syncs inside the loop)
        q_idx_parts, coef_parts, gidx_parts = [], [], []
        for rec in recs:
            q_ids, k_ids = rec['q_ids'], rec['k_ids']
            sim = sim_matmul(profiles_n[q_ids], profiles_n[k_ids])
            # TODO(synk): torch.topk has no clean Pallas TPU primitive; jax.lax.top_k glue.
            if rec['drop_self']:
                vals, idxs = jax.lax.top_k(sim, proto_k + 1)
                coef, idxs = vals[:, 1:], idxs[:, 1:]
            else:
                coef, idxs = jax.lax.top_k(sim, proto_k)
            # top-k local key positions -> global disease-row ids (tiny int gather on
            # device; the heavy (K, N, H) embedding gather happens ONCE below)
            gidx = jnp.take(jnp.asarray(k_ids, jnp.int32), idxs, axis=0)   # (nq, K)
            q_idx_parts.append(np.asarray(q_ids, np.int32))
            coef_parts.append(coef.astype(jnp.float32))
            gidx_parts.append(gidx)

        # (c) one batched prototype + gate kernel across all etypes.
        #     Indices/coefs (tiny) are padded first, so the big gathers land directly
        #     in the padded layout -- no per-etype [K, Nq, H] materialization.
        n_qs = [rec['n_q'] for rec in recs]
        n_total = sum(n_qs)
        tile = min(PROTO_TILE_N, _round_up(n_total, 8))
        n_pad = _round_up(n_total, tile)
        q_idx_all = np.zeros((n_pad,), np.int32)
        q_idx_all[:n_total] = np.concatenate(q_idx_parts)
        coef_all = jnp.pad(jnp.concatenate(coef_parts, axis=0),
                           ((0, n_pad - n_total), (0, 0)))
        gidx_all = jnp.pad(jnp.concatenate(gidx_parts, axis=0),
                           ((0, n_pad - n_total), (0, 0)))
        h_dis = h['disease']
        q_emb = jnp.take(h_dis, jnp.asarray(q_idx_all), axis=0)      # (n_pad, H)
        k_emb = jnp.take(h_dis, gidx_all.T, axis=0)                  # (K, n_pad, H)
        w_gate, b_gate = params['W_gate']['disease']
        proto_all = proto_gate(q_emb, k_emb, coef_all, w_gate, b_gate, tile)
        off = 0
        for rec, nq in zip(recs, n_qs):
            rec['proto_off'] = off
            off += nq

    # DistMult scoring: combined bf16 operand table = drug rows + (proto rows OR raw
    # disease rows); per-edge global indices are padded/concatenated and ONE gather
    # per side feeds the fused kernel layout directly (no [E,H] pad/concat copies,
    # no per-etype full-table scatter of h['disease']).
    drug_rows = int(h['drug'].shape[0])
    if proto:
        table = jnp.concatenate([h['drug'].astype(OPERAND_DTYPE),
                                 proto_all.astype(OPERAND_DTYPE)], axis=0)
    else:
        table = jnp.concatenate([h['drug'].astype(OPERAND_DTYPE),
                                 h['disease'].astype(OPERAND_DTYPE)], axis=0)
    dis_base = drug_rows

    u_parts, v_parts, rel_list = [], [], []
    for rec in recs:
        et = rec['etype']
        src_t, _, dst_t = et
        s_ids, d_ids = batch_np[et]
        if proto:
            dis_idx = dis_base + rec['proto_off'] + rec['inv']
            if src_t == 'disease':
                u_parts.append(dis_idx)
                v_parts.append(d_ids)                       # drug table offset == 0
            else:
                u_parts.append(s_ids)
                v_parts.append(dis_idx)
        else:
            if src_t == 'disease':
                u_parts.append(dis_base + s_ids)
                v_parts.append(d_ids)
            else:
                u_parts.append(s_ids)
                v_parts.append(dis_base + d_ids)
        rel_list.append(rel2idx[et])

    segs = _fused_distmult_from_indices(table, u_parts, v_parts, rel_list, W,
                                        apply_sigmoid=False)
    s_parts = []
    for rec, seg in zip(recs, segs):
        scores[rec['etype']] = seg
        s_parts.append(seg)
    s_l = np.asarray(jnp.concatenate(s_parts)).reshape(-1)
    return scores, s_l


# ------------------------- plain-JAX reference (validation only) -------------------------

def _reference_finetune(h, params, batch_edges, G_keys, disease_profiles, proto_k):
    # Reuses the Pallas sim path so top-k tie-breaking is identical; everything
    # downstream (weighted sum, gate, DistMult with the same bf16 operand casts)
    # is independent plain JAX.
    W = params['W']
    rel2idx = params['rel2idx']
    wg, bg = params['W_gate']['disease']
    hdim = W.shape[1]
    wq, wo = wg[0, :hdim], wg[0, hdim:]
    prof_n = l2_normalize_rows(disease_profiles)
    drug_tab = h['drug'].astype(jnp.bfloat16).astype(jnp.float32)
    scores = {}
    for et in ETYPES_DD:
        src_t, _, dst_t = et
        s_ids = np.asarray(batch_edges[et][0])
        d_ids = np.asarray(batch_edges[et][1])
        src_keys = np.asarray(G_keys[et][0])
        if src_t == 'disease':
            q_ids, k_ids, dis_edge = np.unique(s_ids), src_keys, s_ids
        else:
            q_ids, k_ids, dis_edge = np.unique(d_ids), np.asarray(G_keys[et][1]), d_ids
        q_h = h['disease'][q_ids]
        k_h = h['disease'][k_ids]
        sim = sim_matmul(prof_n[q_ids], prof_n[k_ids])
        if np.unique(s_ids).shape[0] == src_keys.shape[0]:
            vals, idxs = jax.lax.top_k(sim, proto_k + 1)
            coef, idxs = vals[:, 1:], idxs[:, 1:]
        else:
            coef, idxs = jax.lax.top_k(sim, proto_k)
        coef = coef / jnp.maximum(jnp.sum(jnp.abs(coef), axis=1, keepdims=True), 1e-12)
        out = jnp.sum(k_h[idxs] * coef[:, :, None], axis=1)
        gate = _sigmoid(jnp.sum(q_h * wq[None, :] + out * wo[None, :],
                                axis=1, keepdims=True) + bg.reshape(1, 1))
        proto_emb = (1.0 - gate) * q_h + gate * out
        _, inv = np.unique(dis_edge, return_inverse=True)
        dis_op = proto_emb[inv].astype(jnp.bfloat16).astype(jnp.float32)
        if src_t == 'disease':
            hu, hv = dis_op, drug_tab[d_ids]
        else:
            hu, hv = drug_tab[s_ids], dis_op
        scores[et] = jnp.sum(hu * W[rel2idx[et]][None, :] * hv, axis=1)
    return scores


# ------------------------- demo -------------------------

if __name__ == "__main__":
    key = jax.random.PRNGKey(0)
    keys = jax.random.split(key, 8)

    n_hid = 32
    n_drug, n_disease = 12, 16
    profile_dim = 64
    proto_k = 4
    n_edges_batch = 10

    h = {
        'drug': jax.random.normal(keys[0], (n_drug, n_hid), jnp.float32),
        'disease': jax.random.normal(keys[1], (n_disease, n_hid), jnp.float32),
    }

    rel2idx = {et: i for i, et in enumerate(ETYPES_DD)}
    lim_w = float(np.sqrt(6.0 / (len(ETYPES_DD) + n_hid)))
    W = jax.random.uniform(keys[2], (len(ETYPES_DD), n_hid), jnp.float32, -lim_w, lim_w)
    lim_g = float(np.sqrt(6.0 / (2 * n_hid + 1)))
    W_gate = {
        'disease': (jax.random.uniform(keys[3], (1, 2 * n_hid), jnp.float32, -lim_g, lim_g),
                    jnp.zeros((1,), jnp.float32)),
        'drug': (jax.random.uniform(keys[4], (1, 2 * n_hid), jnp.float32, -lim_g, lim_g),
                 jnp.zeros((1,), jnp.float32)),
    }
    params = {'W': W, 'rel2idx': rel2idx, 'W_gate': W_gate}

    # 'all_nodes_profile' vectors (binary disease profiles), deterministic
    disease_profiles = (jax.random.uniform(keys[5], (n_disease, profile_dim)) < 0.3
                        ).astype(jnp.float32)

    # synthetic batch graph edges + full-graph key node sets per etype
    rng = np.random.RandomState(0)

    def _rand_ids(n_nodes, n_edges, n_min_unique):
        base = rng.permutation(n_nodes)[:n_min_unique]
        extra = rng.randint(0, n_nodes, size=n_edges - n_min_unique)
        return np.concatenate([base, extra]).astype(np.int32)

    batch_edges, G_keys = {}, {}
    for et in ETYPES_DD:
        src_t, _, dst_t = et
        n_src = n_drug if src_t == 'drug' else n_disease
        n_dst = n_drug if dst_t == 'drug' else n_disease
        batch_edges[et] = (jnp.asarray(_rand_ids(n_src, n_edges_batch, 6), jnp.int32),
                           jnp.asarray(_rand_ids(n_dst, n_edges_batch, 6), jnp.int32))
    for et in ETYPES_DD:
        src_t, _, dst_t = et
        n_src = n_drug if src_t == 'drug' else n_disease
        n_dst = n_drug if dst_t == 'drug' else n_disease
        if src_t == 'disease':
            # key set == batch query set -> exercises the "drop self-similarity" branch
            G_keys[et] = (np.unique(np.asarray(batch_edges[et][0])), np.arange(n_dst))
        else:
            G_keys[et] = (np.arange(n_src), np.arange(n_dst))

    # --- main (fine-tune) mode: proto prototypes + learned gate + DistMult scoring ---
    scores, s_l = distmult_predictor_forward(
        h, params, batch_edges, G_keys, disease_profiles,
        pretrain_mode=False, proto=True, proto_k=proto_k, agg_measure='learn')
    for v in scores.values():
        jax.block_until_ready(v)

    # --- pretrain mode: sigmoid(DistMult) over all etypes with edges ---
    scores_pt, s_l_pt = distmult_predictor_forward(
        h, params, batch_edges, G_keys, disease_profiles, pretrain_mode=True)
    jax.block_until_ready(s_l_pt)

    # --- correctness checks against plain-JAX references ---
    # 1) cosine-similarity kernel vs jnp cosine on the full profile matrix
    nrm = jnp.maximum(jnp.sqrt(jnp.sum(disease_profiles * disease_profiles,
                                       axis=1, keepdims=True)), 1e-8)
    pn_ref = disease_profiles / nrm
    sim_ref = jnp.einsum('ip,jp->ij', pn_ref, pn_ref,
                         precision=jax.lax.Precision.HIGHEST)
    sim_pal = sim_matmul(l2_normalize_rows(disease_profiles),
                         l2_normalize_rows(disease_profiles))
    np.testing.assert_allclose(np.asarray(sim_pal), np.asarray(sim_ref),
                               rtol=1e-4, atol=1e-5)

    # 2) fine-tune path (proto gate + fused DistMult, bf16 operands) vs reference
    scores_ref = _reference_finetune(h, params, batch_edges, G_keys,
                                     disease_profiles, proto_k)
    for et in ETYPES_DD:
        np.testing.assert_allclose(np.asarray(scores[et]), np.asarray(scores_ref[et]),
                                   rtol=3e-3, atol=3e-3)

    # 3) pretrain path vs reference (same bf16 operand casts)
    for et in ETYPES_DD:
        s_ids, d_ids = batch_edges[et]
        hu_r = h[et[0]].astype(jnp.bfloat16).astype(jnp.float32)[s_ids]
        hv_r = h[et[2]].astype(jnp.bfloat16).astype(jnp.float32)[d_ids]
        ref = _sigmoid(jnp.sum(hu_r * W[rel2idx[et]][None, :] * hv_r, axis=1))
        np.testing.assert_allclose(np.asarray(scores_pt[et]), np.asarray(ref),
                                   rtol=2e-3, atol=2e-4)

    assert s_l.shape == (len(ETYPES_DD) * n_edges_batch,)
    assert np.asarray(s_l_pt).shape == (len(ETYPES_DD) * n_edges_batch,)
    assert np.all(np.isfinite(s_l)) and np.all(np.isfinite(np.asarray(s_l_pt)))
    print("KERNEL_OK")
</pallas_src>

<mosaic_0001>
module attributes {stable_mosaic.version = 11 : i64} {
  func.func @_l2_normalize_kernel(%arg0: i32, %arg1: memref<16x64xf32, #tpu.memory_space<vmem>>, %arg2: memref<16x64xf32, #tpu.memory_space<vmem>>) attributes {dimension_semantics = [#tpu.dimension_semantics<parallel>], iteration_bounds = array<i64: 1>, scalar_prefetch = 0 : i64, scratch_operands = 0 : i64, tpu.core_type = #tpu.core_type<tc>, window_params = [{transform_indices = @transform_0, window_bounds = array<i64: 16, 64>}, {transform_indices = @transform_1, window_bounds = array<i64: 16, 64>}]} {
    %c0 = arith.constant 0 : index
    %c0_0 = arith.constant 0 : index
    %0 = vector.load %arg1[%c0, %c0_0] : memref<16x64xf32, #tpu.memory_space<vmem>>, vector<16x64xf32>
    %1 = arith.mulf %0, %0 : vector<16x64xf32>
    %cst = arith.constant dense<0.000000e+00> : vector<16xf32>
    %2 = vector.multi_reduction <add>, %1, %cst [1] : vector<16x64xf32> to vector<16xf32>
    %3 = vector.shape_cast %2 : vector<16xf32> to vector<16x1xf32>
    %cst_1 = arith.constant 1.000000e-16 : f32
    %4 = vector.broadcast %cst_1 : f32 to vector<16x1xf32>
    %5 = arith.maximumf %3, %4 : vector<16x1xf32>
    %6 = math.rsqrt %5 : vector<16x1xf32>
    %7 = vector.broadcast %6 : vector<16x1xf32> to vector<16x64xf32>
    %8 = arith.mulf %0, %7 : vector<16x64xf32>
    %c0_2 = arith.constant 0 : index
    %c0_3 = arith.constant 0 : index
    %9 = vector.load %arg2[%c0_2, %c0_3] : memref<16x64xf32, #tpu.memory_space<vmem>>, vector<16x64xf32>
    tpu.vector_store %arg2[%c0_2, %c0_3], %8 {strides = array<i32>} : memref<16x64xf32, #tpu.memory_space<vmem>>, vector<16x64xf32>,
    return
  }
  func.func @transform_0(%arg0: i32) -> (i32, i32) {
    %c0_i32 = arith.constant 0 : i32
    %c0_i32_0 = arith.constant 0 : i32
    return %arg0, %c0_i32 : i32, i32
  }
  func.func @transform_1(%arg0: i32) -> (i32, i32) {
    %c0_i32 = arith.constant 0 : i32
    %c0_i32_0 = arith.constant 0 : i32
    return %arg0, %c0_i32 : i32, i32
  }
}

</mosaic_0001>

<llo_original>
// kernel: tpu_custom_call.1
$region0: #{tpu_custom_call.1}
  #allocation0 [shape = 'u32[]', space=smem, size = 0x4, offset = 0x4, fixed_abs, tag = 'smem constant byte address 0x4 - core index']
  #allocation1 [shape = 'u32[144,128]{1,0:T(1,128)}', space=vmem, size = 0x12000, scoped, tag = 'internal scratch']
  %s0 = inlined_call_operand.hbm [shape: f32[16,64], index: 0, kind: input, shape index: {}]
  %s1 = inlined_call_operand.hbm [shape: f32[16,64], index: 1, kind: output, shape index: {}]
  %s2 = sld [smem:[#allocation0]]
  $region18: #{tpu_custom_call.1} parent=0
    _
  %s4 = ssub.s32 1, %s2
  %s5 = scalar_select 0, %s4, %s2
  $region1: #{tpu_custom_call.1} parent=0
    #allocation2 [shape = 'u8[8192]{0}', space=vmem, size = 0x2000, scoped, tag = 'input window, operand 0, single buffered']
    #allocation3 [shape = 's32[1]{0}', space=sflag, size = 0x4, scoped, tag = 'scoped memory for tpu_custom_call.1']
    #allocation4 [shape = 's32[1]{0}', space=sflag, size = 0x4, scoped, tag = 'scoped memory for tpu_custom_call.1']
    #allocation5 [shape = 'u8[8192]{0}', space=vmem, size = 0x2000, scoped, tag = 'output window, operand 0, single buffered']
    %6 = vsyncpa [#allocation3], 0
    %7 = vsyncpa [#allocation4], 0
    // Predicated region
    $region2: #{tpu_custom_call.1} parent=1 // pred_check
      _
    $region3: #{tpu_custom_call.1} parent=1 // pred_check_branch
      %9 = sbr.rel (0) target = $region5
    $region4: #{tpu_custom_call.1} parent=1 // pred_region
      %s11 = ssub.s32 256, 256
      %12 = vsyncadd [#allocation3], %s11
      %s13 = sshll.u32 [#allocation2], 4
      %s14 = int_to_ptr.vmem [resolvable:$true] %s13
      %19 = dma.hbm_to_vmem [thread:$0]  %s0, 256, %s14, [#allocation3], 128, 128, 8
    $region5: #{tpu_custom_call.1} parent=1 // pred_fallthru
      _
    // Predicated region
    $region6: #{tpu_custom_call.1} parent=1 // pred_check
      _
    $region7: #{tpu_custom_call.1} parent=1 // pred_check_branch
      %21 = sbr.rel (0) target = $region9
    $region8: #{tpu_custom_call.1} parent=1 // pred_region
      %22 = dma.done [#allocation3], 256
    $region9: #{tpu_custom_call.1} parent=1 // pred_fallthru
      _
    %v23 = vld [vmem:[#allocation2] sm:$0xff]
    %v24 = vld [vmem:[#allocation2 + $0x8] sm:$0xff]
    %v25 = vmul.f32 %v23, %v23
    %v26 = vmul.f32 %v24, %v24
    %vm27 = vcmask 523264
    %v28 = vsel %vm27, %v25, 0.0
    %29 = vadd.xlane.f32.xlu0 %v28
    %v30 = vpop.xlane.xlu0 %29
    %v31 = vsel %vm27, %v26, 0.0
    %32 = vadd.xlane.f32.xlu0 %v31
    %v33 = vpop.xlane.xlu0 %32
    %v34 = vmax.f32 %v30, 1e-16
    %v35 = vmax.f32 %v33, 1e-16
    %v36 = vrsqrt.pop %v34
    %v37 = vrsqrt.pop %v35
    %v38 = vmul.f32 %v23, %v36
    %v39 = vmul.f32 %v24, %v37
    %40 = vst.msk [vmem:[#allocation5] sm:$0xff] %vm27, %v38
    %41 = vst.msk [vmem:[#allocation5 + $0x8] sm:$0xff] %vm27, %v39
    // Predicated region
    $region10: #{tpu_custom_call.1} parent=1 // pred_check
      _
    $region11: #{tpu_custom_call.1} parent=1 // pred_check_branch
      %43 = sbr.rel (0) target = $region13
    $region12: #{tpu_custom_call.1} parent=1 // pred_region
      %s45 = ssub.s32 256, 256
      %46 = vsyncadd [#allocation4], %s45
      %s47 = sshll.u32 [#allocation5], 4
      %s48 = int_to_ptr.vmem [resolvable:$true] %s47
      %53 = dma.vmem_to_hbm [thread:$0]  %s48, 256, %s1, [#allocation4], 128, 128, 8
    $region13: #{tpu_custom_call.1} parent=1 // pred_fallthru
      _
    // Predicated region
    $region14: #{tpu_custom_call.1} parent=1 // pred_check
      _
    $region15: #{tpu_custom_call.1} parent=1 // pred_check_branch
      %55 = sbr.rel (0) target = $region17
    $region16: #{tpu_custom_call.1} parent=1 // pred_region
      %56 = dma.done [#allocation4], 256
    $region17: #{tpu_custom_call.1} parent=1 // pred_fallthru
      _
    %57 = vsyncpa [#allocation3], 1
    %58 = vsyncpa [#allocation4], 1

</llo_original>
